<compile_context>
chip_gen: v5e
topology: v5e:2x2
jax: 0.10.0
libtpu: 0.0.40
codegen_flags: <defaults>
</compile_context>

<pallas_src>
import functools
import math

import jax
import jax.numpy as jnp
from jax import lax
from jax.experimental import pallas as pl
from jax.experimental.pallas import tpu as pltpu


def _normal_h_kernel(x_ref, o_ref, *, seg_w, lw):
    # Block: (TM, LW). Each row holds LW // seg_w original W-segments laid out
    # contiguously along the lane axis.
    x = x_ref[...]
    if lw % 128 == 0:
        # Left-rotate-by-1 along lanes, expressed as a positive shift so it
        # lowers to the (otherwise idle) XLU rotate slot with no VMEM temp.
        x_next = pltpu.roll(x, shift=lw - 1, axis=1)
    else:
        # Rare non-lane-dense fallback path (see wrapper): slice + concat.
        x_next = jnp.concatenate([x[:, 1:], x[:, :1]], axis=1)
    # Replicate-pad boundary: last column of every W-segment is zero. Build the
    # mask on one row only and let jnp.where broadcast it over sublanes; this
    # also kills any cross-segment leakage from the rotate wraparound.
    col = lax.broadcasted_iota(jnp.int32, (1, lw), 1)
    seg_last = (col % seg_w) == (seg_w - 1)
    o_ref[...] = jnp.where(seg_last, jnp.zeros((), dtype=x.dtype), x_next - x)


def _pick_row_tile(rows_packed, lw, itemsize, sub, target_block_bytes, min_blocks=4):
    """Pick the row-tile (sublane) size.

    Biggest tile under the byte budget that still yields >= min_blocks grid
    steps (pipelining + v7x megacore), preferring exact divisors of the row
    count (no ragged last block) and even block counts (clean 2-TC split).
    """
    if rows_packed <= sub:
        return rows_packed                      # single block == full extent
    tm_budget = max(sub, (target_block_bytes // max(lw * itemsize, 1)) // sub * sub)
    tm_split = max(sub, (rows_packed // min_blocks) // sub * sub)
    tm_cap = min(tm_budget, tm_split)
    divisors = [d for d in range(sub, tm_cap + 1, sub) if rows_packed % d == 0]
    if divisors:
        best = max(divisors)
        even = [d for d in divisors if (rows_packed // d) % 2 == 0 and 2 * d >= best]
        return max(even) if even else best
    # No suitable divisor: ragged last block, handled by the cdiv grid
    # (OOB reads are don't-cares per-row; OOB writes are dropped by Pallas).
    return tm_cap


def normal_h_forward(x, channels=3):
    """Equivalent of normal_h(channels, dim=2).forward(x) for NCHW input."""
    N, C, H, W = x.shape
    assert C == channels, "input channels must match module channels"

    dtype = x.dtype
    itemsize = jnp.dtype(dtype).itemsize
    rows = N * C * H

    # ---- generation-gated budgets (VMEM: v5e/v6e 128 MiB, v7x 64 MiB). ----
    try:
        vmem_cap = int(getattr(pltpu.get_tpu_info(), "vmem_capacity_bytes", 0) or 0)
    except Exception:
        vmem_cap = 0
    if vmem_cap >= 100 * 1024 * 1024:            # v5e / v6e
        target_block_bytes = 16 * 1024 * 1024
        vmem_limit_cap = 96 * 1024 * 1024
    else:                                        # v7x or unknown: conservative
        target_block_bytes = 8 * 1024 * 1024
        vmem_limit_cap = 48 * 1024 * 1024

    # ---- lane packing: minimal P so P*W is a multiple of 128 (lane-dense
    # stores); the packing is a free reshape, so it needs rows % P == 0. ----
    p_min = 128 // math.gcd(W, 128)
    if rows % p_min == 0:
        P = p_min
    else:
        # TODO(synk): rows = N*C*H lacks the factor 128/gcd(W,128); lane-dense
        # packing via a free reshape is impossible without an extra HBM pad
        # copy, so keep W-wide (masked-store) blocks to preserve the minimal
        # 2x HBM traffic instead of 6x via pad + slice.
        P = 1
    LW = P * W
    rows_packed = rows // P
    x2d = x.reshape(rows_packed, LW)             # free reshape, no HBM copy

    # ---- row tile: dtype-dependent sublane multiple, >= 4 blocks, no pad. ----
    sub = max(8, 32 // itemsize)                 # 8 f32, 16 bf16/f16, 32 int8
    TM = _pick_row_tile(rows_packed, LW, itemsize, sub, target_block_bytes)
    n_blocks = pl.cdiv(rows_packed, TM)
    block_bytes = TM * LW * itemsize
    # Explicit limit: double-buffered in+out (4x block) plus slack; mandatory
    # on v5e (16 MiB scoped default), capped well under v7x's 64 MiB physical.
    vmem_limit = int(min(vmem_limit_cap, max(32 * 1024 * 1024, 5 * block_bytes)))

    kernel = functools.partial(_normal_h_kernel, seg_w=W, lw=LW)

    out2d = pl.pallas_call(
        kernel,
        out_shape=jax.ShapeDtypeStruct((rows_packed, LW), dtype),
        grid_spec=pltpu.PrefetchScalarGridSpec(
            num_scalar_prefetch=0,
            grid=(n_blocks,),
            in_specs=[pl.BlockSpec((TM, LW), lambda i: (i, 0))],
            out_specs=pl.BlockSpec((TM, LW), lambda i: (i, 0)),
        ),
        compiler_params=pltpu.CompilerParams(
            dimension_semantics=("parallel",),
            vmem_limit_bytes=vmem_limit,
        ),
        cost_estimate=pl.CostEstimate(
            flops=rows * W,
            transcendentals=0,
            bytes_accessed=2 * rows * W * itemsize,
        ),
    )(x2d)

    return out2d.reshape(N, C, H, W)


def _reference(x):
    # Pure-JAX reference mirroring F.pad(..., 'replicate') + grouped conv2d
    # with per-channel weight [0, -1, 1].
    xp = jnp.pad(x, ((0, 0), (0, 0), (0, 0), (1, 1)), mode="edge")
    return xp[..., 2:] - xp[..., 1:-1]


if __name__ == "__main__":
    key = jax.random.PRNGKey(0)
    N, C, H, W = 2, 4, 16, 16   # channels=4 module instance
    x = jax.random.normal(key, (N, C, H, W), dtype=jnp.float32)

    out = normal_h_forward(x, channels=C)
    out = jax.block_until_ready(out)

    ref = _reference(x)
    assert out.shape == (N, C, H, W)
    assert jnp.allclose(out, ref, atol=1e-6), "mismatch vs reference"

    print("KERNEL_OK")
</pallas_src>

<mosaic_0001>
module attributes {stable_mosaic.version = 11 : i64} {
  func.func @_normal_h_kernel(%arg0: i32, %arg1: memref<8x128xf32, #tpu.memory_space<vmem>>, %arg2: memref<8x128xf32, #tpu.memory_space<vmem>>) attributes {dimension_semantics = [#tpu.dimension_semantics<parallel>], iteration_bounds = array<i64: 2>, scalar_prefetch = 0 : i64, scratch_operands = 0 : i64, tpu.core_type = #tpu.core_type<tc>, window_params = [{transform_indices = @transform_0, window_bounds = array<i64: 8, 128>}, {transform_indices = @transform_1, window_bounds = array<i64: 8, 128>}]} {
    %c0 = arith.constant 0 : index
    %c0_0 = arith.constant 0 : index
    %0 = vector.load %arg1[%c0, %c0_0] : memref<8x128xf32, #tpu.memory_space<vmem>>, vector<8x128xf32>
    %c127_i32 = arith.constant 127 : i32
    %1 = tpu.dynamic_rotate %0 by %c127_i32 dim 1 : vector<8x128xf32>, i32 -> vector<8x128xf32>
    %2 = tpu.iota {dimensions = array<i32: 1>} : vector<1x128xi32>
    %c16_i32 = arith.constant 16 : i32
    %c0_i32 = arith.constant 0 : i32
    %3 = arith.cmpi eq, %c16_i32, %c0_i32 : i32
    %c1_i32 = arith.constant 1 : i32
    %4 = arith.select %3, %c1_i32, %c16_i32 : i32
    %5 = vector.broadcast %4 : i32 to vector<1x128xi32>
    %6 = arith.remsi %2, %5 : vector<1x128xi32>
    %c0_i32_1 = arith.constant 0 : i32
    %7 = vector.broadcast %c0_i32_1 : i32 to vector<1x128xi32>
    %8 = arith.cmpi ne, %6, %7 : vector<1x128xi32>
    %c0_i32_2 = arith.constant 0 : i32
    %9 = vector.broadcast %c0_i32_2 : i32 to vector<1x128xi32>
    %10 = arith.cmpi slt, %6, %9 : vector<1x128xi32>
    %c0_i32_3 = arith.constant 0 : i32
    %11 = arith.cmpi slt, %4, %c0_i32_3 : i32
    %12 = vector.broadcast %11 : i1 to vector<1x128xi1>
    %13 = vector.broadcast %12 : vector<1x128xi1> to vector<1x128xi1>
    %14 = arith.xori %10, %13 : vector<1x128xi1>
    %15 = arith.andi %14, %8 : vector<1x128xi1>
    %16 = vector.broadcast %4 : i32 to vector<1x128xi32>
    %17 = arith.addi %6, %16 : vector<1x128xi32>
    %18 = arith.select %15, %17, %6 : vector<1x128xi1>, vector<1x128xi32>
    %c15_i32 = arith.constant 15 : i32
    %19 = vector.broadcast %c15_i32 : i32 to vector<1x128xi32>
    %20 = arith.cmpi eq, %18, %19 : vector<1x128xi32>
    %21 = arith.subf %1, %0 : vector<8x128xf32>
    %cst = arith.constant 0.000000e+00 : f32
    %22 = vector.shape_cast %20 : vector<1x128xi1> to vector<1x128xi1>
    %23 = vector.broadcast %22 : vector<1x128xi1> to vector<8x128xi1>
    %24 = vector.broadcast %cst : f32 to vector<8x128xf32>
    %25 = arith.select %23, %24, %21 : vector<8x128xi1>, vector<8x128xf32>
    %c0_4 = arith.constant 0 : index
    %c0_5 = arith.constant 0 : index
    %26 = vector.load %arg2[%c0_4, %c0_5] : memref<8x128xf32, #tpu.memory_space<vmem>>, vector<8x128xf32>
    tpu.vector_store %arg2[%c0_4, %c0_5], %25 {strides = array<i32>} : memref<8x128xf32, #tpu.memory_space<vmem>>, vector<8x128xf32>,
    return
  }
  func.func @transform_0(%arg0: i32) -> (i32, i32) {
    %c0_i32 = arith.constant 0 : i32
    %c0_i32_0 = arith.constant 0 : i32
    return %arg0, %c0_i32 : i32, i32
  }
  func.func @transform_1(%arg0: i32) -> (i32, i32) {
    %c0_i32 = arith.constant 0 : i32
    %c0_i32_0 = arith.constant 0 : i32
    return %arg0, %c0_i32 : i32, i32
  }
}

</mosaic_0001>

<llo_original>
// kernel: tpu_custom_call.1
$region0: #{tpu_custom_call.1}
  #allocation0 [shape = 'u32[]', space=smem, size = 0x4, offset = 0x4, fixed_abs, tag = 'smem constant byte address 0x4 - core index']
  #allocation1 [shape = 'u32[72,128]{1,0:T(1,128)}', space=vmem, size = 0x9000, scoped, tag = 'internal scratch']
  %s0 = inlined_call_operand.hbm [shape: f32[16,128], index: 0, kind: input, shape index: {}]
  %s1 = inlined_call_operand.hbm [shape: f32[16,128], index: 1, kind: output, shape index: {}]
  %s2 = sld [smem:[#allocation0]]
  $region41: #{tpu_custom_call.1} parent=0
    _
  %s4 = ssub.s32 1, %s2
  %s5 = scalar_select 0, %s4, %s2
  $region1: #{tpu_custom_call.1} parent=0
    #allocation2 [shape = 'u8[8192]{0}', space=vmem, size = 0x2000, scoped, tag = 'input window, operand 0']
    #allocation3 [shape = 's32[2]{0}', space=sflag, size = 0x8, scoped, tag = 'scoped memory for tpu_custom_call.1']
    #allocation4 [shape = 's32[2]{0}', space=sflag, size = 0x8, scoped, tag = 'scoped memory for tpu_custom_call.1']
    #allocation5 [shape = 'u8[8192]{0}', space=vmem, size = 0x2000, scoped, tag = 'output window, operand 0']
    %6 = vsyncpa [#allocation3], 0
    %s7 = scalar_lea.sflag [#allocation3], 1
    %8 = vsyncpa %s7, 0
    %9 = vsyncpa [#allocation4], 0
    %s10 = scalar_lea.sflag [#allocation4], 1
    %11 = vsyncpa %s10, 0
    loop: start=0, step=1, limit=4
    $region2: #{tpu_custom_call.1} parent=1 // loop_pre_header
      _
    $region3: #{tpu_custom_call.1} parent=1 // loop_header
      %s13 = sphi 0, %s17
      %p14 = scmp.ge.s32.totalorder %s13, 4
      %s23 = sphi 0, %s25
      %s26 = sphi 0, %s23
      %s27 = sphi 0, %s26
      %s43 = sphi 0, %s27
      %s49 = sphi 0, %s51
      %s52 = sphi 0, %s49
      %s53 = sphi 0, %s52
      %s69 = sphi 0, %s53
    $region4: #{tpu_custom_call.1} parent=1 // loop_header_branch
      %16 = sbr.rel (%p14) target = $region8
    $region5: #{tpu_custom_call.1} parent=1 // loop_body
      %s18 = ssub.s32 %s13, 1
      %s19 = ssub.s32 %s13, 2
      %s20 = sadd.s32 %s13, 1
      %s21 = ssub.s32 %s13, %s20
      %p22 = scmp.eq.s32.totalorder %s21, 0
      %s24 = sadd.s32 %s23, 1
      %s25 = scalar_select %p22, %s23, %s24
      %p28 = pneg %p22
      %p29 = scmp.eq.s32.totalorder %s13, 1
      %p30 = por %p28, %p29
      %p31 = scmp.ne.s32.totalorder %s23, %s26
      %p32 = scmp.eq.s32.totalorder %s13, 0
      %p33 = por %p31, %p32
      %p34 = scmp.ne.s32.totalorder %s23, %s26
      %p35 = scmp.eq.s32.totalorder %s18, 1
      %p36 = por %p34, %p35
      %p37 = scmp.ne.s32.totalorder %s26, %s27
      %p38 = scmp.eq.s32.totalorder %s18, 0
      %p39 = por %p37, %p38
      %p40 = scmp.ne.s32.totalorder %s26, %s27
      %p41 = scmp.eq.s32.totalorder %s19, 1
      %p42 = por %p40, %p41
      %p44 = scmp.ne.s32.totalorder %s27, %s43
      %p45 = scmp.eq.s32.totalorder %s19, 0
      %p46 = por %p44, %p45
      %s47 = ssub.s32 %s13, %s20
      %p48 = scmp.eq.s32.totalorder %s47, 0
      %s50 = sadd.s32 %s49, 1
      %s51 = scalar_select %p48, %s49, %s50
      %p54 = pneg %p48
      %p55 = scmp.eq.s32.totalorder %s13, 1
      %p56 = por %p54, %p55
      %p57 = scmp.ne.s32.totalorder %s49, %s52
      %p58 = scmp.eq.s32.totalorder %s13, 0
      %p59 = por %p57, %p58
      %p60 = scmp.ne.s32.totalorder %s49, %s52
      %p61 = scmp.eq.s32.totalorder %s18, 1
      %p62 = por %p60, %p61
      %p63 = scmp.ne.s32.totalorder %s52, %s53
      %p64 = scmp.eq.s32.totalorder %s18, 0
      %p65 = por %p63, %p64
      %p66 = scmp.ne.s32.totalorder %s52, %s53
      %p67 = scmp.eq.s32.totalorder %s19, 1
      %p68 = por %p66, %p67
      %p70 = scmp.ne.s32.totalorder %s53, %s69
      %p71 = scmp.eq.s32.totalorder %s19, 0
      %p72 = por %p70, %p71
      %p73 = scmp.le.s32.totalorder 1, %s13
      %p74 = scmp.lt.s32.totalorder %s13, 3
      %p75 = pnand %p73, %p74
      %p76 = pneg %p75
      // Predicated region
      $region9: #{tpu_custom_call.1} parent=5 // pred_check
        _
      $region10: #{tpu_custom_call.1} parent=5 // pred_check_branch
        %78 = sbr.rel (%p75) target = $region12
      $region11: #{tpu_custom_call.1} parent=5 // pred_region
        %s79 = ssub.s32 %s13, 1
      $region12: #{tpu_custom_call.1} parent=5 // pred_fallthru
        _
      %p80 = scmp.lt.s32.totalorder %s13, 2
      // Predicated region
      $region13: #{tpu_custom_call.1} parent=5 // pred_check
        %p81 = pneg %p80
      $region14: #{tpu_custom_call.1} parent=5 // pred_check_branch
        %83 = sbr.rel (%p81) target = $region16
      $region15: #{tpu_custom_call.1} parent=5 // pred_region
        // Predicated region
        $region17: #{tpu_custom_call.1} parent=15 // pred_check
          %p84 = pneg %p33
        $region18: #{tpu_custom_call.1} parent=15 // pred_check_branch
          %86 = sbr.rel (%p84) target = $region20
        $region19: #{tpu_custom_call.1} parent=15 // pred_region
          %s87 = sand.u32 %s23, 1
          %s88 = scalar_lea.sflag [#allocation3], %s87
          %s89 = sand.u32 %s23, 1
          %s90 = smul.addr %s89, 8
          %s91 = scalar_lea.vmem [#allocation2], %s90
          %93 = vsyncadd %s88, 0
          %s94 = smul.addr %s13, 8
          %s95 = scalar_lea.hbm %s0, %s94
          %s97 = sshll.u32 %s95, 4
          %s98 = int_to_ptr.hbm [resolvable:$true] %s97
          %s99 = sshll.u32 %s91, 4
          %s100 = int_to_ptr.vmem [resolvable:$true] %s99
          %102 = dma.hbm_to_vmem [thread:$0]  %s98, 128, %s100, %s88
        $region20: #{tpu_custom_call.1} parent=15 // pred_fallthru
          _
      $region16: #{tpu_custom_call.1} parent=5 // pred_fallthru
        _
      %p103 = scmp.le.s32.totalorder 1, %s13
      %p104 = scmp.lt.s32.totalorder %s13, 3
      %p105 = pnand %p103, %p104
      %p106 = pneg %p105
      // Predicated region
      $region21: #{tpu_custom_call.1} parent=5 // pred_check
        _
      $region22: #{tpu_custom_call.1} parent=5 // pred_check_branch
        %108 = sbr.rel (%p105) target = $region24
      $region23: #{tpu_custom_call.1} parent=5 // pred_region
        %s109 = ssub.s32 %s13, 1
        %s110 = sand.u32 %s26, 1
        %s111 = scalar_lea.sflag [#allocation3], %s110
        %s112 = sand.u32 %s26, 1
        %s113 = smul.addr %s112, 8
        %s114 = scalar_lea.vmem [#allocation2], %s113
        // Predicated region
        $region25: #{tpu_custom_call.1} parent=23 // pred_check
          %p115 = pneg %p39
        $region26: #{tpu_custom_call.1} parent=23 // pred_check_branch
          %117 = sbr.rel (%p115) target = $region28
        $region27: #{tpu_custom_call.1} parent=23 // pred_region
          %119 = dma.done %s111, 128
        $region28: #{tpu_custom_call.1} parent=23 // pred_fallthru
          _
        %s120 = sand.u32 %s26, 1
        %s121 = scalar_lea.sflag [#allocation3], %s120
        %s122 = sand.u32 %s26, 1
        %s123 = smul.addr %s122, 8
        %s124 = scalar_lea.vmem [#allocation2], %s123
        %p125 = pneg %p39
        %p126 = pneg %p36
        %p127 = pneg %p65
        %p128 = pneg %p62
        %s129 = sand.u32 %s52, 1
        %s130 = scalar_lea.sflag [#allocation4], %s129
        %s131 = sand.u32 %s52, 1
        %s132 = smul.addr %s131, 8
        %s133 = scalar_lea.vmem [#allocation5], %s132
        %v134 = vld [vmem:[%s114] sm:$0xff]
        %135 = vrot.lane.b32.xlu0 %v134, 127
        %v136 = vpop.permute.xlu0 %135
        %v137 = vlaneseq
        %v138 = vand.u32 %v137, 127
        %vm139 = vcmp.lt.s32.totalorder %v138, 0
        %v140 = vsub.s32 0, %v138
        %v141 = vsel %vm139, %v140, %v138
        %v142 = vshrl.u32 %v141, 4
        %v143 = vand.u32 %v141, 15
        %v144 = vsub.s32 0, %v143
        %v145 = vsel %vm139, %v144, %v143
        %vm146 = vcmp.ne.s32.totalorder %v145, 0
        %vm147 = vcmp.lt.s32.totalorder %v145, 0
        %vm148 = vmand %vm147, %vm146
        %v149 = vadd.s32 %v145, 16
        %v150 = vsel %vm148, %v149, %v145
        %vm151 = vcmp.eq.s32.totalorder %v150, 15
        %v152 = vsub.f32 %v136, %v134
        %v153 = vsel %vm151, 1, 0
        %vm154 = vcmp.eq.s32.totalorder %v153, 1
        %v155 = vsel %vm154, 0.0, %v152
        %156 = vst [vmem:[%s133] sm:$0xff] %v155
        %s157 = sand.u32 %s52, 1
        %s158 = scalar_lea.sflag [#allocation4], %s157
        %s159 = sand.u32 %s52, 1
        %s160 = smul.addr %s159, 8
        %s161 = scalar_lea.vmem [#allocation5], %s160
        // Predicated region
        $region29: #{tpu_custom_call.1} parent=23 // pred_check
          %p162 = pneg %p62
        $region30: #{tpu_custom_call.1} parent=23 // pred_check_branch
          %164 = sbr.rel (%p162) target = $region32
        $region31: #{tpu_custom_call.1} parent=23 // pred_region
          %166 = vsyncadd %s158, 0
          %s167 = smul.addr %s18, 8
          %s168 = scalar_lea.hbm %s1, %s167
          %s170 = sshll.u32 %s161, 4
          %s171 = int_to_ptr.vmem [resolvable:$true] %s170
          %s172 = sshll.u32 %s168, 4
          %s173 = int_to_ptr.hbm [resolvable:$true] %s172
          %175 = dma.vmem_to_hbm [thread:$0]  %s171, 128, %s173, %s158
        $region32: #{tpu_custom_call.1} parent=23 // pred_fallthru
          _
      $region24: #{tpu_custom_call.1} parent=5 // pred_fallthru
        _
      %p176 = scmp.le.s32.totalorder 2, %s13
      // Predicated region
      $region33: #{tpu_custom_call.1} parent=5 // pred_check
        %p177 = pneg %p176
      $region34: #{tpu_custom_call.1} parent=5 // pred_check_branch
        %179 = sbr.rel (%p177) target = $region36
      $region35: #{tpu_custom_call.1} parent=5 // pred_region
        %s180 = ssub.s32 %s13, 2
        // Predicated region
        $region37: #{tpu_custom_call.1} parent=35 // pred_check
          %p181 = pneg %p68
        $region38: #{tpu_custom_call.1} parent=35 // pred_check_branch
          %183 = sbr.rel (%p181) target = $region40
        $region39: #{tpu_custom_call.1} parent=35 // pred_region
          %s184 = sand.u32 %s53, 1
          %s185 = scalar_lea.sflag [#allocation4], %s184
          %s186 = sand.u32 %s53, 1
          %s187 = smul.addr %s186, 8
          %s188 = scalar_lea.vmem [#allocation5], %s187
          %190 = dma.done %s185, 128
        $region40: #{tpu_custom_call.1} parent=35 // pred_fallthru
          _
      $region36: #{tpu_custom_call.1} parent=5 // pred_fallthru
        _
    $region6: #{tpu_custom_call.1} parent=1 // loop_footer
      %s17 = sadd.s32 1, %s13
    $region7: #{tpu_custom_call.1} parent=1 // loop_footer_branch
      %12 = sbr.rel target = $region3
    $region8: #{tpu_custom_call.1} parent=1 // loop_exit
      _
    %191 = vsyncpa [#allocation3], 1
    %s192 = scalar_lea.sflag [#allocation3], 1
    %193 = vsyncpa %s192, 1
    %194 = vsyncpa [#allocation4], 1
    %s195 = scalar_lea.sflag [#allocation4], 1
    %196 = vsyncpa %s195, 1

</llo_original>
